<compile_context>
chip_gen: v6e
topology: v6e:2x2x1
jax: 0.10.0
libtpu: 0.0.40
codegen_flags: <defaults>
</compile_context>

<pallas_src>
import functools

import jax
import jax.numpy as jnp
from jax.experimental import pallas as pl
from jax.experimental.pallas import tpu as pltpu

# CFG.CKD_temp is not provided by the reference module; fix it deterministically.
CKD_TEMP = 4.0


def _ckd_kernel(s_ref, t_ref, lbl_ref, hard_ref, soft_ref, *, temp, batch, tile_b):
    """One batch tile: writes per-tile (unnormalized) partial CE / KL sums."""
    i = pl.program_id(0)
    s = s_ref[...]
    t = t_ref[...]
    if s.dtype != jnp.float32:          # accept bf16 logits, upcast in-kernel
        s = s.astype(jnp.float32)
    if t.dtype != jnp.float32:
        t = t.astype(jnp.float32)
    labels = lbl_ref[...].astype(jnp.int32)        # (TB, 1)
    TB, C = s.shape
    inv_temp = 1.0 / temp

    # Mask rows past the true batch size (partial last tile reads padded data).
    row_ids = i * tile_b + jax.lax.broadcasted_iota(jnp.int32, (TB, 1), 0)
    valid = row_ids < batch                        # (TB, 1) bool

    # ---- student: one shared row-max for both the T=1 and T=temp LSEs.
    h_max = jnp.max(s, axis=1, keepdims=True)                         # (TB,1)
    h_shift = s - h_max                                               # (TB,C)
    h_lse = jnp.log(jnp.sum(jnp.exp(h_shift), axis=1, keepdims=True)) # (TB,1)

    s_t_shift = h_shift * inv_temp                 # == s/T - max(s/T)
    log_s_sum = jnp.log(jnp.sum(jnp.exp(s_t_shift), axis=1, keepdims=True))

    # ---- teacher at temperature T.
    t_t = t * inv_temp
    t_shift = t_t - jnp.max(t_t, axis=1, keepdims=True)
    t_exp = jnp.exp(t_shift)
    t_sum = jnp.sum(t_exp, axis=1, keepdims=True)
    log_t_sum = jnp.log(t_sum)

    # ---- fused KL:  sum_c p_t * (log_p_t - log_p_s)
    #   = (sum_c t_exp*(t_shift - s_t_shift)) / t_sum + log(s_sum) - log(t_sum)
    # (no full-tile p_t / log_p_t / log_p_s arrays are ever formed)
    prod_sum = jnp.sum(t_exp * (t_shift - s_t_shift), axis=1, keepdims=True)
    kl_row = prod_sum * pl.reciprocal(t_sum, approx=False) + log_s_sum - log_t_sum
    kl_part = jnp.sum(jnp.where(valid, kl_row, 0.0))

    # ---- hard CE:  ce_row = h_lse - h_shift[label]   (reuses shifted logits)
    cls_iota = jax.lax.broadcasted_iota(jnp.int32, (TB, C), 1)
    h_shift_at_lbl = jnp.sum(jnp.where(cls_iota == labels, h_shift, 0.0),
                             axis=1, keepdims=True)
    ce_row = h_lse - h_shift_at_lbl
    ce_part = jnp.sum(jnp.where(valid, ce_row, 0.0))

    # Lane-dense, (8,128)-aligned per-tile partial outputs (unmasked stores).
    hard_ref[...] = jnp.full(hard_ref.shape, ce_part, dtype=jnp.float32)
    soft_ref[...] = jnp.full(soft_ref.shape, kl_part, dtype=jnp.float32)


def _vmem_capacity_bytes():
    """Per-TensorCore VMEM capacity; falls back to v7x's 64 MiB (most restrictive)."""
    try:
        cap = getattr(pltpu.get_tpu_info(), "vmem_capacity_bytes", None)
        if cap:
            return int(cap)
    except Exception:
        pass
    return 64 * 1024 * 1024


# Conservative live-VMEM model for one grid step of the fused kernel:
#   ~9 live (TB, C) f32 temporaries + 2 logits inputs x 2 pipeline buffers.
_N_F32_TEMPS = 9
_N_INPUT_BUFS = 2 * 2


def _choose_tile_b(batch, n_classes, in_itemsize, tile_budget_bytes):
    row_align = 16 if in_itemsize < 4 else 8       # bf16 packs 16 rows / vreg
    bytes_per_row = n_classes * (_N_F32_TEMPS * 4 + _N_INPUT_BUFS * in_itemsize)
    max_tb = (tile_budget_bytes // bytes_per_row) // row_align * row_align
    if max_tb < row_align:
        # TODO(synk): add a C-tiled grid axis with online-softmax accumulators
        # for very large vocabularies instead of failing.
        raise ValueError(
            f"CKD Pallas kernel: n_classes={n_classes} is too large for the "
            f"per-tile VMEM budget of {tile_budget_bytes} bytes; C-tiling is "
            f"not implemented.")
    batch_rounded = ((batch + row_align - 1) // row_align) * row_align
    return int(min(max_tb, batch_rounded))


def ckd_loss(students_preds, teachers_preds, hard_label, temp=CKD_TEMP):
    """Returns (loss, students_loss, distillation_loss) as f32 scalars."""
    B, C = students_preds.shape
    assert teachers_preds.shape == (B, C)
    lbl = hard_label.astype(jnp.int32).reshape(B, 1)

    # VMEM-capacity-aware limits: ~96 MiB scoped limit on v5e/v6e (128 MiB
    # physical), ~48 MiB on v7x (64 MiB physical); tiles sized to ~85% of it.
    vmem_cap = _vmem_capacity_bytes()
    vmem_limit = max(32 * 1024 * 1024, min(int(vmem_cap * 3 // 4), 96 * 1024 * 1024))
    tile_budget = int(vmem_limit * 0.85)

    in_itemsize = students_preds.dtype.itemsize
    TB = _choose_tile_b(B, C, in_itemsize, tile_budget)
    G = pl.cdiv(B, TB)

    part_shape = jax.ShapeDtypeStruct((G, 8, 128), jnp.float32)
    bytes_in = (students_preds.size * students_preds.dtype.itemsize
                + teachers_preds.size * teachers_preds.dtype.itemsize
                + lbl.size * 4)
    cost = pl.CostEstimate(
        flops=16 * B * C,
        transcendentals=3 * B * C + 4 * B,
        bytes_accessed=bytes_in + 2 * G * 8 * 128 * 4,
    )

    hard, soft = pl.pallas_call(
        functools.partial(_ckd_kernel, temp=float(temp), batch=B, tile_b=TB),
        out_shape=(part_shape, part_shape),
        grid=(G,),
        in_specs=[
            pl.BlockSpec((TB, C), lambda i: (i, 0)),
            pl.BlockSpec((TB, C), lambda i: (i, 0)),
            pl.BlockSpec((TB, 1), lambda i: (i, 0)),
        ],
        out_specs=(
            pl.BlockSpec((1, 8, 128), lambda i: (i, 0, 0)),
            pl.BlockSpec((1, 8, 128), lambda i: (i, 0, 0)),
        ),
        compiler_params=pltpu.CompilerParams(
            dimension_semantics=("parallel",),   # shards batch tiles across TCs
            vmem_limit_bytes=vmem_limit,
        ),
        cost_estimate=cost,
    )(students_preds, teachers_preds, lbl)

    # Tiny final reductions + normalization in the wrapper (true B, not padded).
    ce = jnp.sum(hard[:, 0, 0]) / B
    kl = jnp.sum(soft[:, 0, 0]) / B
    return ce + kl, ce, kl


def _ckd_reference(s, t, lbl, temp=CKD_TEMP):
    s = s.astype(jnp.float32)
    t = t.astype(jnp.float32)
    log_p_s = jax.nn.log_softmax(s / temp, axis=1)
    p_t = jax.nn.softmax(t / temp, axis=1)
    log_p_t = jax.nn.log_softmax(t / temp, axis=1)
    kl = jnp.sum(p_t * (log_p_t - log_p_s)) / s.shape[0]
    log_p = jax.nn.log_softmax(s, axis=1)
    ce = -jnp.mean(jnp.take_along_axis(log_p, lbl.astype(jnp.int32)[:, None], axis=1))
    return ce + kl, ce, kl


if __name__ == "__main__":
    # B not a multiple of 8 -> exercises padded-row masking.
    B, C = 10, 32
    key = jax.random.PRNGKey(0)
    k1, k2, k3 = jax.random.split(key, 3)
    students = jax.random.normal(k1, (B, C), dtype=jnp.float32)
    teachers = jax.random.normal(k2, (B, C), dtype=jnp.float32)
    labels = jax.random.randint(k3, (B,), 0, C, dtype=jnp.int32)

    # f32 path
    loss, hard, soft = ckd_loss(students, teachers, labels)
    jax.block_until_ready((loss, hard, soft))
    ref = _ckd_reference(students, teachers, labels)
    for got, want in zip((loss, hard, soft), ref):
        assert jnp.allclose(got, want, atol=1e-4, rtol=1e-4), (got, want)

    # bf16 path: logits consumed directly (no wrapper upcast -> half HBM bytes).
    s_bf = students.astype(jnp.bfloat16)
    t_bf = teachers.astype(jnp.bfloat16)
    loss_b, hard_b, soft_b = ckd_loss(s_bf, t_bf, labels)
    jax.block_until_ready((loss_b, hard_b, soft_b))
    ref_b = _ckd_reference(s_bf, t_bf, labels)
    for got, want in zip((loss_b, hard_b, soft_b), ref_b):
        assert jnp.allclose(got, want, atol=2e-3, rtol=2e-3), (got, want)

    print("KERNEL_OK")
</pallas_src>

<mosaic_0001>
module attributes {stable_mosaic.version = 11 : i64} {
  func.func @_ckd_kernel(%arg0: i32, %arg1: memref<16x32xf32, #tpu.memory_space<vmem>>, %arg2: memref<16x32xf32, #tpu.memory_space<vmem>>, %arg3: memref<16x1xi32, #tpu.memory_space<vmem>>, %arg4: memref<1x8x128xf32, #tpu.memory_space<vmem>>, %arg5: memref<1x8x128xf32, #tpu.memory_space<vmem>>) attributes {dimension_semantics = [#tpu.dimension_semantics<parallel>], iteration_bounds = array<i64: 1>, scalar_prefetch = 0 : i64, scratch_operands = 0 : i64, tpu.core_type = #tpu.core_type<tc>, window_params = [{transform_indices = @transform_0, window_bounds = array<i64: 16, 32>}, {transform_indices = @transform_1, window_bounds = array<i64: 16, 32>}, {transform_indices = @transform_2, window_bounds = array<i64: 16, 1>}, {transform_indices = @transform_3, window_bounds = array<i64: 1, 8, 128>}, {transform_indices = @transform_4, window_bounds = array<i64: 1, 8, 128>}]} {
    %c0 = arith.constant 0 : index
    %c0_0 = arith.constant 0 : index
    %0 = vector.load %arg1[%c0, %c0_0] : memref<16x32xf32, #tpu.memory_space<vmem>>, vector<16x32xf32>
    %c0_1 = arith.constant 0 : index
    %c0_2 = arith.constant 0 : index
    %1 = vector.load %arg2[%c0_1, %c0_2] : memref<16x32xf32, #tpu.memory_space<vmem>>, vector<16x32xf32>
    %c0_3 = arith.constant 0 : index
    %c0_4 = arith.constant 0 : index
    %2 = vector.load %arg3[%c0_3, %c0_4] : memref<16x1xi32, #tpu.memory_space<vmem>>, vector<16x1xi32>
    %c16_i32 = arith.constant 16 : i32
    %3 = arith.muli %arg0, %c16_i32 : i32
    %4 = tpu.iota {dimensions = array<i32: 0>} : vector<16x1xi32>
    %5 = vector.broadcast %3 : i32 to vector<16x1xi32>
    %6 = arith.addi %5, %4 : vector<16x1xi32>
    %c10_i32 = arith.constant 10 : i32
    %7 = vector.broadcast %c10_i32 : i32 to vector<16x1xi32>
    %8 = arith.cmpi slt, %6, %7 : vector<16x1xi32>
    %cst = arith.constant dense<0xFF800000> : vector<16xf32>
    %9 = vector.multi_reduction <maximumf>, %0, %cst [1] : vector<16x32xf32> to vector<16xf32>
    %10 = vector.shape_cast %9 : vector<16xf32> to vector<16x1xf32>
    %11 = vector.broadcast %10 : vector<16x1xf32> to vector<16x32xf32>
    %12 = arith.subf %0, %11 : vector<16x32xf32>
    %13 = math.exp %12 : vector<16x32xf32>
    %cst_5 = arith.constant dense<0.000000e+00> : vector<16xf32>
    %14 = vector.multi_reduction <add>, %13, %cst_5 [1] : vector<16x32xf32> to vector<16xf32>
    %15 = vector.shape_cast %14 : vector<16xf32> to vector<16x1xf32>
    %16 = math.log %15 : vector<16x1xf32>
    %cst_6 = arith.constant 2.500000e-01 : f32
    %17 = vector.broadcast %cst_6 : f32 to vector<16x32xf32>
    %18 = arith.mulf %12, %17 : vector<16x32xf32>
    %19 = math.exp %18 : vector<16x32xf32>
    %cst_7 = arith.constant dense<0.000000e+00> : vector<16xf32>
    %20 = vector.multi_reduction <add>, %19, %cst_7 [1] : vector<16x32xf32> to vector<16xf32>
    %21 = vector.shape_cast %20 : vector<16xf32> to vector<16x1xf32>
    %22 = math.log %21 : vector<16x1xf32>
    %cst_8 = arith.constant 2.500000e-01 : f32
    %23 = vector.broadcast %cst_8 : f32 to vector<16x32xf32>
    %24 = arith.mulf %1, %23 : vector<16x32xf32>
    %cst_9 = arith.constant dense<0xFF800000> : vector<16xf32>
    %25 = vector.multi_reduction <maximumf>, %24, %cst_9 [1] : vector<16x32xf32> to vector<16xf32>
    %26 = vector.shape_cast %25 : vector<16xf32> to vector<16x1xf32>
    %27 = vector.broadcast %26 : vector<16x1xf32> to vector<16x32xf32>
    %28 = arith.subf %24, %27 : vector<16x32xf32>
    %29 = math.exp %28 : vector<16x32xf32>
    %cst_10 = arith.constant dense<0.000000e+00> : vector<16xf32>
    %30 = vector.multi_reduction <add>, %29, %cst_10 [1] : vector<16x32xf32> to vector<16xf32>
    %31 = vector.shape_cast %30 : vector<16xf32> to vector<16x1xf32>
    %32 = math.log %31 : vector<16x1xf32>
    %33 = arith.subf %28, %18 : vector<16x32xf32>
    %34 = arith.mulf %29, %33 : vector<16x32xf32>
    %cst_11 = arith.constant dense<0.000000e+00> : vector<16xf32>
    %35 = vector.multi_reduction <add>, %34, %cst_11 [1] : vector<16x32xf32> to vector<16xf32>
    %36 = vector.shape_cast %35 : vector<16xf32> to vector<16x1xf32>
    %37 = tpu.reciprocal %31 : vector<16x1xf32> -> vector<16x1xf32>
    %38 = arith.mulf %36, %37 : vector<16x1xf32>
    %39 = arith.addf %38, %22 : vector<16x1xf32>
    %40 = arith.subf %39, %32 : vector<16x1xf32>
    %cst_12 = arith.constant 0.000000e+00 : f32
    %41 = vector.broadcast %cst_12 : f32 to vector<16x1xf32>
    %42 = arith.select %8, %40, %41 : vector<16x1xi1>, vector<16x1xf32>
    %43 = vector.shape_cast %42 : vector<16x1xf32> to vector<1x16x1xf32>
    %cst_13 = arith.constant dense<0.000000e+00> : vector<1xf32>
    %44 = vector.multi_reduction <add>, %43, %cst_13 [1, 2] : vector<1x16x1xf32> to vector<1xf32>
    %45 = vector.shape_cast %44 : vector<1xf32> to vector<1x1x1xf32>
    %46 = vector.extract %45[0, 0, 0] : f32 from vector<1x1x1xf32>
    %47 = tpu.iota {dimensions = array<i32: 1>} : vector<16x32xi32>
    %48 = vector.broadcast %2 : vector<16x1xi32> to vector<16x32xi32>
    %49 = arith.cmpi eq, %47, %48 : vector<16x32xi32>
    %cst_14 = arith.constant 0.000000e+00 : f32
    %50 = vector.broadcast %cst_14 : f32 to vector<16x32xf32>
    %51 = arith.select %49, %12, %50 : vector<16x32xi1>, vector<16x32xf32>
    %cst_15 = arith.constant dense<0.000000e+00> : vector<16xf32>
    %52 = vector.multi_reduction <add>, %51, %cst_15 [1] : vector<16x32xf32> to vector<16xf32>
    %53 = vector.shape_cast %52 : vector<16xf32> to vector<16x1xf32>
    %54 = arith.subf %16, %53 : vector<16x1xf32>
    %cst_16 = arith.constant 0.000000e+00 : f32
    %55 = vector.broadcast %cst_16 : f32 to vector<16x1xf32>
    %56 = arith.select %8, %54, %55 : vector<16x1xi1>, vector<16x1xf32>
    %57 = vector.shape_cast %56 : vector<16x1xf32> to vector<1x16x1xf32>
    %cst_17 = arith.constant dense<0.000000e+00> : vector<1xf32>
    %58 = vector.multi_reduction <add>, %57, %cst_17 [1, 2] : vector<1x16x1xf32> to vector<1xf32>
    %59 = vector.shape_cast %58 : vector<1xf32> to vector<1x1x1xf32>
    %60 = vector.extract %59[0, 0, 0] : f32 from vector<1x1x1xf32>
    %61 = vector.broadcast %60 : f32 to vector<1x8x128xf32>
    %c0_18 = arith.constant 0 : index
    %c0_19 = arith.constant 0 : index
    %c0_20 = arith.constant 0 : index
    %62 = vector.load %arg4[%c0_18, %c0_19, %c0_20] : memref<1x8x128xf32, #tpu.memory_space<vmem>>, vector<1x8x128xf32>
    tpu.vector_store %arg4[%c0_18, %c0_19, %c0_20], %61 {strides = array<i32>} : memref<1x8x128xf32, #tpu.memory_space<vmem>>, vector<1x8x128xf32>,
    %63 = vector.broadcast %46 : f32 to vector<1x8x128xf32>
    %c0_21 = arith.constant 0 : index
    %c0_22 = arith.constant 0 : index
    %c0_23 = arith.constant 0 : index
    %64 = vector.load %arg5[%c0_21, %c0_22, %c0_23] : memref<1x8x128xf32, #tpu.memory_space<vmem>>, vector<1x8x128xf32>
    tpu.vector_store %arg5[%c0_21, %c0_22, %c0_23], %63 {strides = array<i32>} : memref<1x8x128xf32, #tpu.memory_space<vmem>>, vector<1x8x128xf32>,
    return
  }
  func.func @transform_0(%arg0: i32) -> (i32, i32) {
    %c0_i32 = arith.constant 0 : i32
    %c0_i32_0 = arith.constant 0 : i32
    return %arg0, %c0_i32 : i32, i32
  }
  func.func @transform_1(%arg0: i32) -> (i32, i32) {
    %c0_i32 = arith.constant 0 : i32
    %c0_i32_0 = arith.constant 0 : i32
    return %arg0, %c0_i32 : i32, i32
  }
  func.func @transform_2(%arg0: i32) -> (i32, i32) {
    %c0_i32 = arith.constant 0 : i32
    %c0_i32_0 = arith.constant 0 : i32
    return %arg0, %c0_i32 : i32, i32
  }
  func.func @transform_3(%arg0: i32) -> (i32, i32, i32) {
    %c0_i32 = arith.constant 0 : i32
    %c0_i32_0 = arith.constant 0 : i32
    %c0_i32_1 = arith.constant 0 : i32
    return %arg0, %c0_i32, %c0_i32_0 : i32, i32, i32
  }
  func.func @transform_4(%arg0: i32) -> (i32, i32, i32) {
    %c0_i32 = arith.constant 0 : i32
    %c0_i32_0 = arith.constant 0 : i32
    %c0_i32_1 = arith.constant 0 : i32
    return %arg0, %c0_i32, %c0_i32_0 : i32, i32, i32
  }
}

</mosaic_0001>

<llo_original>
// kernel: tpu_custom_call.1
$region0: #{tpu_custom_call.1}
  #allocation0 [shape = 'u32[]', space=smem, size = 0x4, offset = 0x4, fixed_abs, tag = 'smem constant byte address 0x4 - core index']
  #allocation1 [shape = 'u32[144,128]{1,0:T(1,128)}', space=vmem, size = 0x12000, scoped, tag = 'internal scratch']
  %s0 = inlined_call_operand.vmem [shape: f32[10,32], index: 0, kind: input, shape index: {}]
  %s1 = inlined_call_operand.hbm [shape: f32[10,32], index: 1, kind: input, shape index: {}]
  %s2 = inlined_call_operand.vmem [shape: s32[10,1], index: 2, kind: input, shape index: {}]
  %s3 = inlined_call_operand.hbm [shape: f32[1,8,128], index: 3, kind: output, shape index: {0}]
  %s4 = inlined_call_operand.hbm [shape: f32[1,8,128], index: 4, kind: output, shape index: {1}]
  %5 = xla_tuple %s3, %s4
  %s6 = sld [smem:[#allocation0]]
  $region34: #{tpu_custom_call.1} parent=0
    _
  %s8 = ssub.s32 1, %s6
  %s9 = scalar_select 0, %s8, %s6
  $region1: #{tpu_custom_call.1} parent=0
    #allocation2 [shape = 'u8[8192]{0}', space=vmem, size = 0x2000, scoped, tag = 'input window, operand 1, single buffered']
    #allocation3 [shape = 's32[1]{0}', space=sflag, size = 0x4, scoped, tag = 'scoped memory for tpu_custom_call.1']
    #allocation4 [shape = 's32[1]{0}', space=sflag, size = 0x4, scoped, tag = 'scoped memory for tpu_custom_call.1']
    #allocation5 [shape = 'u8[4096]{0}', space=vmem, size = 0x1000, scoped, tag = 'output window, operand 0, single buffered']
    #allocation6 [shape = 'u8[4096]{0}', space=vmem, size = 0x1000, scoped, tag = 'output window, operand 1, single buffered']
    #allocation7 [shape = 's32[1]{0}', space=sflag, size = 0x4, scoped, tag = 'scoped memory for tpu_custom_call.1']
    %10 = vsyncpa [#allocation3], 0
    %11 = vsyncpa [#allocation4], 0
    %12 = vsyncpa [#allocation7], 0
    // Predicated region
    $region2: #{tpu_custom_call.1} parent=1 // pred_check
      _
    $region3: #{tpu_custom_call.1} parent=1 // pred_check_branch
      %14 = sbr.rel (0) target = $region5
    $region4: #{tpu_custom_call.1} parent=1 // pred_region
      _
    $region5: #{tpu_custom_call.1} parent=1 // pred_fallthru
      _
    // Predicated region
    $region6: #{tpu_custom_call.1} parent=1 // pred_check
      _
    $region7: #{tpu_custom_call.1} parent=1 // pred_check_branch
      %16 = sbr.rel (0) target = $region9
    $region8: #{tpu_custom_call.1} parent=1 // pred_region
      %s18 = ssub.s32 256, 256
      %19 = vsyncadd [#allocation3], %s18
      %s20 = sshll.u32 [#allocation2], 4
      %s21 = int_to_ptr.vmem [resolvable:$true] %s20
      %26 = dma.hbm_to_vmem [thread:$0]  %s1, 256, %s21, [#allocation3], 128, 128, 8
    $region9: #{tpu_custom_call.1} parent=1 // pred_fallthru
      _
    // Predicated region
    $region10: #{tpu_custom_call.1} parent=1 // pred_check
      _
    $region11: #{tpu_custom_call.1} parent=1 // pred_check_branch
      %28 = sbr.rel (0) target = $region13
    $region12: #{tpu_custom_call.1} parent=1 // pred_region
      _
    $region13: #{tpu_custom_call.1} parent=1 // pred_fallthru
      _
    // Predicated region
    $region14: #{tpu_custom_call.1} parent=1 // pred_check
      _
    $region15: #{tpu_custom_call.1} parent=1 // pred_check_branch
      %30 = sbr.rel (0) target = $region17
    $region16: #{tpu_custom_call.1} parent=1 // pred_region
      %31 = dma.done [#allocation3], 256
    $region17: #{tpu_custom_call.1} parent=1 // pred_fallthru
      _
    %v32 = vld [vmem:[%s0] sm:$0xff]
    %v33 = vld [vmem:[%s0 + $0x8] sm:$0xff]
    %v34 = vld [vmem:[#allocation2] sm:$0xff]
    %v35 = vld [vmem:[#allocation2 + $0x8] sm:$0xff]
    %v36 = vld [vmem:[%s2] sm:$0xff]
    %v37 = vld [vmem:[%s2 + $0x8] sm:$0xff]
    %s38 = smul.u32 0, 16
    %v39 = vlaneseq
    %v40 = vshrl.u32 %v39, 7
    %v41 = vadd.s32 %v40, 8
    %v42 = vstv %s38
    %v43 = vadd.s32 %v42, %v40
    %v44 = vadd.s32 %v42, %v41
    %vm45 = vcmp.lt.s32.totalorder %v43, 10
    %vm46 = vcmp.lt.s32.totalorder %v44, 10
    %vm47 = vcmask 261120
    %v48 = vsel %vm47, %v32, -inf
    %49 = vmax.xlane.f32.xlu0 %v48
    %v50 = vpop.xlane.xlu0 %49
    %v51 = vsel %vm47, %v33, -inf
    %52 = vmax.xlane.f32.xlu0 %v51
    %v53 = vpop.xlane.xlu0 %52
    %v54 = vsub.f32 %v32, %v50
    %v55 = vsub.f32 %v33, %v53
    %v56 = vmul.f32 %v54, 1.442695
    %v57 = vpow.pop %v56
    %v58 = vmul.f32 %v55, 1.442695
    %v59 = vpow.pop %v58
    %v60 = vsel %vm47, %v57, 0.0
    %61 = vadd.xlane.f32.xlu0 %v60
    %v62 = vpop.xlane.xlu0 %61
    %v63 = vsel %vm47, %v59, 0.0
    %64 = vadd.xlane.f32.xlu0 %v63
    %v65 = vpop.xlane.xlu0 %64
    %v66 = vlog2.pop %v62
    %v67 = vmul.f32 %v66, 0.6931472
    %v68 = vlog2.pop %v65
    %v69 = vmul.f32 %v68, 0.6931472
    %v70 = vmul.f32 %v54, 0.25
    %v71 = vmul.f32 %v55, 0.25
    %v72 = vmul.f32 %v70, 1.442695
    %v73 = vpow.pop %v72
    %v74 = vmul.f32 %v71, 1.442695
    %v75 = vpow.pop %v74
    %v76 = vsel %vm47, %v73, 0.0
    %77 = vadd.xlane.f32.xlu0 %v76
    %v78 = vpop.xlane.xlu0 %77
    %v79 = vsel %vm47, %v75, 0.0
    %80 = vadd.xlane.f32.xlu0 %v79
    %v81 = vpop.xlane.xlu0 %80
    %v82 = vlog2.pop %v78
    %v83 = vmul.f32 %v82, 0.6931472
    %v84 = vlog2.pop %v81
    %v85 = vmul.f32 %v84, 0.6931472
    %v86 = vmul.f32 %v34, 0.25
    %v87 = vmul.f32 %v35, 0.25
    %v88 = vsel %vm47, %v86, -inf
    %89 = vmax.xlane.f32.xlu0 %v88
    %v90 = vpop.xlane.xlu0 %89
    %v91 = vsel %vm47, %v87, -inf
    %92 = vmax.xlane.f32.xlu0 %v91
    %v93 = vpop.xlane.xlu0 %92
    %v94 = vsub.f32 %v86, %v90
    %v95 = vsub.f32 %v87, %v93
    %v96 = vmul.f32 %v94, 1.442695
    %v97 = vpow.pop %v96
    %v98 = vmul.f32 %v95, 1.442695
    %v99 = vpow.pop %v98
    %v100 = vsel %vm47, %v97, 0.0
    %101 = vadd.xlane.f32.xlu0 %v100
    %v102 = vpop.xlane.xlu0 %101
    %v103 = vsel %vm47, %v99, 0.0
    %104 = vadd.xlane.f32.xlu0 %v103
    %v105 = vpop.xlane.xlu0 %104
    %v106 = vlog2.pop %v102
    %v107 = vmul.f32 %v106, 0.6931472
    %v108 = vlog2.pop %v105
    %v109 = vmul.f32 %v108, 0.6931472
    %v110 = vsub.f32 %v94, %v70
    %v111 = vsub.f32 %v95, %v71
    %v112 = vmul.f32 %v97, %v110
    %v113 = vmul.f32 %v99, %v111
    %v114 = vsel %vm47, %v112, 0.0
    %115 = vadd.xlane.f32.xlu0 %v114
    %v116 = vpop.xlane.xlu0 %115
    %v117 = vsel %vm47, %v113, 0.0
    %118 = vadd.xlane.f32.xlu0 %v117
    %v119 = vpop.xlane.xlu0 %118
    %v120 = vrcp.pop %v102
    %v121 = vrcp.pop %v105
    %v122 = vmul.f32 %v116, %v120
    %v123 = vmul.f32 %v119, %v121
    %v124 = vadd.f32 %v122, %v83
    %v125 = vadd.f32 %v123, %v85
    %v126 = vsub.f32 %v124, %v107
    %v127 = vsub.f32 %v125, %v109
    %v128 = vsel %vm45, %v126, 0.0
    %v129 = vsel %vm46, %v127, 0.0
    %vm130 = vcmask 7168
    %v131 = vsel %vm130, %v128, 0.0
    %v132 = vsel %vm130, %v129, 0.0
    %v133 = vadd.f32 %v131, %v132
    %134 = vadd.xlane.f32.xlu0 %v133
    %v135 = vpop.xlane.xlu0 %134
    %v136 = vrot.slane %v135, 4
    %v137 = vadd.f32 %v135, %v136
    %v138 = vrot.slane %v137, 2
    %v139 = vadd.f32 %v137, %v138
    %v140 = vrot.slane %v139, 1
    %v141 = vadd.f32 %v139, %v140
    %s142 = vtos %v141
    %v143 = vlaneseq
    %v144 = vand.u32 %v143, 127
    %145 = vset.pattern.permute.xlu0 0
    %146 = vperm.xlu0 %145, %v36
    %v147 = vpop.permute.xlu0 %146
    %148 = vset.pattern.permute.xlu0 0
    %149 = vperm.xlu0 %148, %v37
    %v150 = vpop.permute.xlu0 %149
    %vm151 = vcmp.eq.s32.totalorder %v144, %v147
    %vm152 = vcmp.eq.s32.totalorder %v144, %v150
    %v153 = vsel %vm151, %v54, 0.0
    %v154 = vsel %vm152, %v55, 0.0
    %v155 = vsel %vm47, %v153, 0.0
    %156 = vadd.xlane.f32.xlu0 %v155
    %v157 = vpop.xlane.xlu0 %156
    %v158 = vsel %vm47, %v154, 0.0
    %159 = vadd.xlane.f32.xlu0 %v158
    %v160 = vpop.xlane.xlu0 %159
    %v161 = vsub.f32 %v67, %v157
    %v162 = vsub.f32 %v69, %v160
    %v163 = vsel %vm45, %v161, 0.0
    %v164 = vsel %vm46, %v162, 0.0
    %v165 = vsel %vm130, %v163, 0.0
    %v166 = vsel %vm130, %v164, 0.0
    %v167 = vadd.f32 %v165, %v166
    %168 = vadd.xlane.f32.xlu0 %v167
    %v169 = vpop.xlane.xlu0 %168
    %v170 = vrot.slane %v169, 4
    %v171 = vadd.f32 %v169, %v170
    %v172 = vrot.slane %v171, 2
    %v173 = vadd.f32 %v171, %v172
    %v174 = vrot.slane %v173, 1
    %v175 = vadd.f32 %v173, %v174
    %s176 = vtos %v175
    %v177 = vstv %s176
    %178 = vst [vmem:[#allocation5] sm:$0xff] %v177
    %v179 = vstv %s142
    %180 = vst [vmem:[#allocation6] sm:$0xff] %v179
    // Predicated region
    $region18: #{tpu_custom_call.1} parent=1 // pred_check
      _
    $region19: #{tpu_custom_call.1} parent=1 // pred_check_branch
      %182 = sbr.rel (0) target = $region21
    $region20: #{tpu_custom_call.1} parent=1 // pred_region
      %s184 = ssub.s32 128, 128
      %185 = vsyncadd [#allocation4], %s184
      %s187 = sshll.u32 [#allocation5], 4
      %s188 = int_to_ptr.vmem [resolvable:$true] %s187
      %190 = dma.vmem_to_hbm [thread:$0]  %s188, 128, %s3, [#allocation4]
    $region21: #{tpu_custom_call.1} parent=1 // pred_fallthru
      _
    // Predicated region
    $region22: #{tpu_custom_call.1} parent=1 // pred_check
      _
    $region23: #{tpu_custom_call.1} parent=1 // pred_check_branch
      %192 = sbr.rel (0) target = $region25
    $region24: #{tpu_custom_call.1} parent=1 // pred_region
      %s194 = ssub.s32 128, 128
      %195 = vsyncadd [#allocation7], %s194
      %s197 = sshll.u32 [#allocation6], 4
      %s198 = int_to_ptr.vmem [resolvable:$true] %s197
      %200 = dma.vmem_to_hbm [thread:$0]  %s198, 128, %s4, [#allocation7]
    $region25: #{tpu_custom_call.1} parent=1 // pred_fallthru
      _
    // Predicated region
    $region26: #{tpu_custom_call.1} parent=1 // pred_check
      _
    $region27: #{tpu_custom_call.1} parent=1 // pred_check_branch
      %202 = sbr.rel (0) target = $region29
    $region28: #{tpu_custom_call.1} parent=1 // pred_region
      %203 = dma.done [#allocation4], 128
    $region29: #{tpu_custom_call.1} parent=1 // pred_fallthru
      _
    // Predicated region
    $region30: #{tpu_custom_call.1} parent=1 // pred_check
      _
    $region31: #{tpu_custom_call.1} parent=1 // pred_check_branch
      %205 = sbr.rel (0) target = $region33
    $region32: #{tpu_custom_call.1} parent=1 // pred_region
      %206 = dma.done [#allocation7], 128
    $region33: #{tpu_custom_call.1} parent=1 // pred_fallthru
      _
    %207 = vsyncpa [#allocation3], 1
    %208 = vsyncpa [#allocation4], 1
    %209 = vsyncpa [#allocation7], 1

</llo_original>
